<compile_context>
chip_gen: v7x
topology: tpu7x:2x2x1
jax: 0.10.0
libtpu: 0.0.40
codegen_flags: <defaults>
</compile_context>

<pallas_src>
import functools

import jax
import jax.numpy as jnp
from jax.experimental import pallas as pl
from jax.experimental.pallas import tpu as pltpu

EPS = 1e-5          # torch.nn.InstanceNorm2d default eps
NEG_SLOPE = 0.2     # LeakyReLU negative slope


def _round_up(x, m):
    return ((x + m - 1) // m) * m


# ---------------------------------------------------------------------------
# Pass 1a: conv-as-matmul + per-(sample, channel) sum / sumsq (InstanceNorm path)
# grid = (N, Cout_tiles, P_tiles, K_tiles)  — K (and P for the stats output)
# are reduction axes ("arbitrary"); N / Cout tiles are "parallel".
# ---------------------------------------------------------------------------
def _conv_stats_kernel(p_ref, w_ref, y_ref, stats_ref, acc_ref):
    # p_ref:(1,tp,tk) bf16  w_ref:(tk,tc) bf16  y_ref:(1,tp,tc) f32
    # stats_ref:(1,8,tc) f32 (row0=sum, row1=sumsq)  acc_ref:(tp,tc) f32
    p = pl.program_id(2)
    k = pl.program_id(3)

    @pl.when(jnp.logical_and(p == 0, k == 0))
    def _():
        stats_ref[...] = jnp.zeros_like(stats_ref)

    @pl.when(k == 0)
    def _():
        acc_ref[...] = jnp.zeros_like(acc_ref)

    acc_ref[...] += jnp.dot(p_ref[0], w_ref[...],
                            preferred_element_type=jnp.float32)

    @pl.when(k == pl.num_programs(3) - 1)
    def _():
        y = acc_ref[...]                                   # (tp, tc) f32
        y_ref[0] = y
        s = jnp.sum(y, axis=0, keepdims=True)              # (1, tc)
        ss = jnp.sum(y * y, axis=0, keepdims=True)         # (1, tc)
        upd = jnp.concatenate(
            [s, ss, jnp.zeros((6, s.shape[1]), jnp.float32)], axis=0)  # (8, tc)
        stats_ref[0] += upd


# ---------------------------------------------------------------------------
# Pass 1b: conv-as-matmul + bias + LeakyReLU (initial_layer path, no norm)
# ---------------------------------------------------------------------------
def _conv_bias_lrelu_kernel(p_ref, w_ref, b_ref, o_ref, acc_ref):
    k = pl.program_id(3)

    @pl.when(k == 0)
    def _():
        acc_ref[...] = jnp.zeros_like(acc_ref)

    acc_ref[...] += jnp.dot(p_ref[0], w_ref[...],
                            preferred_element_type=jnp.float32)

    @pl.when(k == pl.num_programs(3) - 1)
    def _():
        y = acc_ref[...] + b_ref[...]
        o_ref[0] = jnp.where(y > 0, y, NEG_SLOPE * y).astype(o_ref.dtype)


# ---------------------------------------------------------------------------
# Pass 2: InstanceNorm from sum/sumsq + LeakyReLU (elementwise, fully parallel)
# ---------------------------------------------------------------------------
def _norm_lrelu_kernel(y_ref, stats_ref, o_ref, *, inv_count):
    y = y_ref[0]                                   # (tp, tc) f32
    st = stats_ref[0]                              # (8, tc)  row0=sum row1=sumsq
    mean = st[0:1, :] * inv_count                  # (1, tc)
    ex2 = st[1:2, :] * inv_count
    var = jnp.maximum(ex2 - mean * mean, 0.0)      # biased variance (torch default)
    yn = (y - mean) * jax.lax.rsqrt(var + EPS)
    o_ref[0] = jnp.where(yn > 0, yn, NEG_SLOPE * yn).astype(o_ref.dtype)


def patchgan_block(x, weight, bias=None, *, stride=2, padding=1,
                   initial_layer=False, tp=1024, tk=512, tc=256):
    """x: (N, Cin, H, W) NCHW; weight: (Cout, Cin, K, K). Returns NCHW f32."""
    N, Cin, H, W = x.shape
    Cout, _, K, _ = weight.shape

    # --- glue: reflect pad + im2col via K*K strided slices (NHWC, no gathers) ---
    xh = jnp.transpose(x, (0, 2, 3, 1))                       # (N, H, W, Cin)
    xp = jnp.pad(xh, ((0, 0), (padding, padding), (padding, padding), (0, 0)),
                 mode="reflect")
    Hp, Wp = H + 2 * padding, W + 2 * padding
    Ho = (Hp - K) // stride + 1
    Wo = (Wp - K) // stride + 1

    cols = []
    for kh in range(K):
        for kw in range(K):
            cols.append(jax.lax.slice(
                xp,
                (0, kh, kw, 0),
                (N, kh + stride * (Ho - 1) + 1, kw + stride * (Wo - 1) + 1, Cin),
                (1, stride, stride, 1)))                      # (N, Ho, Wo, Cin)
    P = Ho * Wo
    Kd = K * K * Cin
    patches = jnp.concatenate(cols, axis=-1).reshape(N, P, Kd)
    # weight flattened in the same (kh, kw, cin) order as the patch lanes
    wmat = jnp.transpose(weight, (2, 3, 1, 0)).reshape(Kd, Cout)

    # --- pad to lane/sublane-friendly tiles; bf16 operands, f32 accumulation ---
    tp = min(tp, _round_up(P, 8))
    P_pad = _round_up(P, tp)
    tk = min(tk, _round_up(Kd, 128))
    Kd_pad = _round_up(Kd, tk)
    tc = min(tc, _round_up(Cout, 128))
    Cout_pad = _round_up(Cout, tc)

    patches = jnp.pad(patches, ((0, 0), (0, P_pad - P), (0, Kd_pad - Kd)))
    patches = patches.astype(jnp.bfloat16)
    wmat = jnp.pad(wmat, ((0, Kd_pad - Kd), (0, Cout_pad - Cout)))
    wmat = wmat.astype(jnp.bfloat16)

    n_p = P_pad // tp
    n_k = Kd_pad // tk
    n_co = Cout_pad // tc

    cost = pl.CostEstimate(
        flops=2 * N * P_pad * Kd_pad * Cout_pad,
        transcendentals=0,
        bytes_accessed=(N * n_co * P_pad * Kd_pad * 2        # patches (per Cout tile)
                        + N * n_p * Kd_pad * Cout_pad * 2    # weights (per P tile)
                        + N * P_pad * Cout_pad * 4))         # conv output

    use_norm = not initial_layer

    if use_norm:
        # TODO(synk): bias is ignored here — the PyTorch module uses bias=False
        # whenever InstanceNorm is present (initial_layer=False).
        conv_y, stats = pl.pallas_call(
            _conv_stats_kernel,
            out_shape=(jax.ShapeDtypeStruct((N, P_pad, Cout_pad), jnp.float32),
                       jax.ShapeDtypeStruct((N, 8, Cout_pad), jnp.float32)),
            grid_spec=pltpu.PrefetchScalarGridSpec(
                num_scalar_prefetch=0,
                grid=(N, n_co, n_p, n_k),
                in_specs=[
                    pl.BlockSpec((1, tp, tk), lambda n, co, p, k: (n, p, k)),
                    pl.BlockSpec((tk, tc), lambda n, co, p, k: (k, co)),
                ],
                out_specs=[
                    pl.BlockSpec((1, tp, tc), lambda n, co, p, k: (n, p, co)),
                    pl.BlockSpec((1, 8, tc), lambda n, co, p, k: (n, 0, co)),
                ],
                scratch_shapes=[pltpu.VMEM((tp, tc), jnp.float32)],
            ),
            compiler_params=pltpu.CompilerParams(
                dimension_semantics=("parallel", "parallel", "arbitrary",
                                     "arbitrary")),
            cost_estimate=cost,
        )(patches, wmat)

        norm_kernel = functools.partial(_norm_lrelu_kernel, inv_count=1.0 / P)
        out = pl.pallas_call(
            norm_kernel,
            out_shape=jax.ShapeDtypeStruct((N, P_pad, Cout_pad), jnp.float32),
            grid_spec=pltpu.PrefetchScalarGridSpec(
                num_scalar_prefetch=0,
                grid=(N, n_co, n_p),
                in_specs=[
                    pl.BlockSpec((1, tp, tc), lambda n, co, p: (n, p, co)),
                    pl.BlockSpec((1, 8, tc), lambda n, co, p: (n, 0, co)),
                ],
                out_specs=pl.BlockSpec((1, tp, tc), lambda n, co, p: (n, p, co)),
            ),
            compiler_params=pltpu.CompilerParams(
                dimension_semantics=("parallel", "parallel", "parallel")),
        )(conv_y, stats)
    else:
        if bias is None:
            bias = jnp.zeros((Cout,), jnp.float32)
        bvec = jnp.pad(bias.astype(jnp.float32).reshape(1, Cout),
                       ((0, 0), (0, Cout_pad - Cout)))
        out = pl.pallas_call(
            _conv_bias_lrelu_kernel,
            out_shape=jax.ShapeDtypeStruct((N, P_pad, Cout_pad), jnp.float32),
            grid_spec=pltpu.PrefetchScalarGridSpec(
                num_scalar_prefetch=0,
                grid=(N, n_co, n_p, n_k),
                in_specs=[
                    pl.BlockSpec((1, tp, tk), lambda n, co, p, k: (n, p, k)),
                    pl.BlockSpec((tk, tc), lambda n, co, p, k: (k, co)),
                    pl.BlockSpec((1, tc), lambda n, co, p, k: (0, co)),
                ],
                out_specs=pl.BlockSpec((1, tp, tc),
                                       lambda n, co, p, k: (n, p, co)),
                scratch_shapes=[pltpu.VMEM((tp, tc), jnp.float32)],
            ),
            compiler_params=pltpu.CompilerParams(
                dimension_semantics=("parallel", "parallel", "arbitrary",
                                     "arbitrary")),
            cost_estimate=cost,
        )(patches, wmat, bvec)

    y = out[:, :P, :Cout].reshape(N, Ho, Wo, Cout)
    # TODO(synk): the NHWC->NCHW transpose could be elided if the next block
    # consumed NHWC/patch layout directly (PatchGAN stacks these blocks).
    return jnp.transpose(y, (0, 3, 1, 2))


if __name__ == "__main__":
    key = jax.random.PRNGKey(0)
    k_x, k_w, k_b = jax.random.split(key, 3)

    N, Cin, H, W = 2, 4, 16, 16
    Cout, K = 8, 4
    x = jax.random.normal(k_x, (N, Cin, H, W), jnp.float32)
    weight = 0.1 * jax.random.normal(k_w, (Cout, Cin, K, K), jnp.float32)
    bias = 0.1 * jax.random.normal(k_b, (Cout,), jnp.float32)

    # ---- default block: no bias -> InstanceNorm -> LeakyReLU(0.2) ----
    out = patchgan_block(x, weight, initial_layer=False)
    out = jax.block_until_ready(out)
    assert out.shape == (N, Cout, H // 2, W // 2)

    # Reference from bf16-rounded operands (kernel feeds the MXU bf16 with f32
    # accumulation); padding / norm / activation stay f32.
    x_bf = x.astype(jnp.bfloat16).astype(jnp.float32)
    w_bf = weight.astype(jnp.bfloat16).astype(jnp.float32)
    xp = jnp.pad(x_bf, ((0, 0), (0, 0), (1, 1), (1, 1)), mode="reflect")
    conv = jax.lax.conv_general_dilated(
        xp, w_bf, window_strides=(2, 2), padding="VALID",
        dimension_numbers=("NCHW", "OIHW", "NCHW"))
    mean = conv.mean(axis=(2, 3), keepdims=True)
    var = conv.var(axis=(2, 3), keepdims=True)
    ref = (conv - mean) / jnp.sqrt(var + EPS)
    ref = jnp.where(ref > 0, ref, NEG_SLOPE * ref)
    err = float(jnp.max(jnp.abs(out - ref)))
    assert jnp.allclose(out, ref, atol=2e-3, rtol=2e-3), f"norm path err={err}"

    # ---- initial_layer=True: conv with bias -> LeakyReLU (no norm) ----
    out0 = patchgan_block(x, weight, bias, initial_layer=True)
    out0 = jax.block_until_ready(out0)
    conv0 = conv + bias.reshape(1, Cout, 1, 1)
    ref0 = jnp.where(conv0 > 0, conv0, NEG_SLOPE * conv0)
    err0 = float(jnp.max(jnp.abs(out0 - ref0)))
    assert jnp.allclose(out0, ref0, atol=2e-3, rtol=2e-3), f"bias path err={err0}"

    print("KERNEL_OK")
</pallas_src>

<mosaic_0001>
module attributes {stable_mosaic.version = 11 : i64} {
  func.func @_conv_stats_kernel(%arg0: i32, %arg1: i32, %arg2: i32, %arg3: i32, %arg4: memref<1x64x128xbf16, #tpu.memory_space<vmem>>, %arg5: memref<128x128xbf16, #tpu.memory_space<vmem>>, %arg6: memref<1x64x128xf32, #tpu.memory_space<vmem>>, %arg7: memref<1x8x128xf32, #tpu.memory_space<vmem>>, %arg8: memref<64x128xf32, #tpu.memory_space<vmem>>) attributes {dimension_semantics = [#tpu.dimension_semantics<parallel>, #tpu.dimension_semantics<parallel>, #tpu.dimension_semantics<arbitrary>, #tpu.dimension_semantics<arbitrary>], iteration_bounds = array<i64: 2, 1, 1, 1>, scalar_prefetch = 0 : i64, scratch_operands = 1 : i64, tpu.core_type = #tpu.core_type<tc>, window_params = [{transform_indices = @transform_0, window_bounds = array<i64: 1, 64, 128>}, {transform_indices = @transform_1, window_bounds = array<i64: 128, 128>}, {transform_indices = @transform_2, window_bounds = array<i64: 1, 64, 128>}, {transform_indices = @transform_3, window_bounds = array<i64: 1, 8, 128>}]} {
    %c0_i32 = arith.constant 0 : i32
    %0 = arith.cmpi eq, %arg2, %c0_i32 : i32
    %c0_i32_0 = arith.constant 0 : i32
    %1 = arith.cmpi eq, %arg3, %c0_i32_0 : i32
    %2 = arith.andi %0, %1 : i1
    %3 = arith.extui %2 : i1 to i32
    %c0_i32_1 = arith.constant 0 : i32
    %4 = arith.cmpi ne, %3, %c0_i32_1 : i32
    scf.if %4 {
      %cst_14 = arith.constant 0.000000e+00 : f32
      %18 = vector.broadcast %cst_14 : f32 to vector<1x8x128xf32>
      %c0_15 = arith.constant 0 : index
      %c0_16 = arith.constant 0 : index
      %c0_17 = arith.constant 0 : index
      %19 = vector.load %arg7[%c0_15, %c0_16, %c0_17] : memref<1x8x128xf32, #tpu.memory_space<vmem>>, vector<1x8x128xf32>
      tpu.vector_store %arg7[%c0_15, %c0_16, %c0_17], %18 {strides = array<i32>} : memref<1x8x128xf32, #tpu.memory_space<vmem>>, vector<1x8x128xf32>,
    } else {
    }
    %c0_i32_2 = arith.constant 0 : i32
    %5 = arith.cmpi eq, %arg3, %c0_i32_2 : i32
    %6 = arith.extui %5 : i1 to i32
    %c0_i32_3 = arith.constant 0 : i32
    %7 = arith.cmpi ne, %6, %c0_i32_3 : i32
    scf.if %7 {
      %cst_14 = arith.constant 0.000000e+00 : f32
      %18 = vector.broadcast %cst_14 : f32 to vector<64x128xf32>
      %c0_15 = arith.constant 0 : index
      %c0_16 = arith.constant 0 : index
      %19 = vector.load %arg8[%c0_15, %c0_16] : memref<64x128xf32, #tpu.memory_space<vmem>>, vector<64x128xf32>
      tpu.vector_store %arg8[%c0_15, %c0_16], %18 {strides = array<i32>} : memref<64x128xf32, #tpu.memory_space<vmem>>, vector<64x128xf32>,
    } else {
    }
    %c0 = arith.constant 0 : index
    %c0_4 = arith.constant 0 : index
    %8 = vector.load %arg8[%c0, %c0_4] : memref<64x128xf32, #tpu.memory_space<vmem>>, vector<64x128xf32>
    %c0_5 = arith.constant 0 : index
    %c0_6 = arith.constant 0 : index
    %c0_7 = arith.constant 0 : index
    %9 = vector.load %arg4[%c0_5, %c0_6, %c0_7] : memref<1x64x128xbf16, #tpu.memory_space<vmem>>, vector<1x64x128xbf16>
    %10 = vector.shape_cast %9 : vector<1x64x128xbf16> to vector<64x128xbf16>
    %c0_8 = arith.constant 0 : index
    %c0_9 = arith.constant 0 : index
    %11 = vector.load %arg5[%c0_8, %c0_9] : memref<128x128xbf16, #tpu.memory_space<vmem>>, vector<128x128xbf16>
    %cst = arith.constant dense<0.000000e+00> : vector<64x128xf32>
    %12 = tpu.matmul %10, %11, %cst {dimension_numbers = #tpu.dot_dimension_numbers<[1], [0], [0], [1], [0, 0, 1, 1], [], []>} : vector<64x128xbf16>, vector<128x128xbf16>, vector<64x128xf32> -> vector<64x128xf32>
    %13 = arith.addf %8, %12 : vector<64x128xf32>
    %c0_10 = arith.constant 0 : index
    %c0_11 = arith.constant 0 : index
    %14 = vector.load %arg8[%c0_10, %c0_11] : memref<64x128xf32, #tpu.memory_space<vmem>>, vector<64x128xf32>
    tpu.vector_store %arg8[%c0_10, %c0_11], %13 {strides = array<i32>} : memref<64x128xf32, #tpu.memory_space<vmem>>, vector<64x128xf32>,
    %c0_i32_12 = arith.constant 0 : i32
    %15 = arith.cmpi eq, %arg3, %c0_i32_12 : i32
    %16 = arith.extui %15 : i1 to i32
    %c0_i32_13 = arith.constant 0 : i32
    %17 = arith.cmpi ne, %16, %c0_i32_13 : i32
    scf.if %17 {
      %c0_14 = arith.constant 0 : index
      %c0_15 = arith.constant 0 : index
      %18 = vector.load %arg8[%c0_14, %c0_15] : memref<64x128xf32, #tpu.memory_space<vmem>>, vector<64x128xf32>
      %c0_16 = arith.constant 0 : index
      %c0_17 = arith.constant 0 : index
      %c0_18 = arith.constant 0 : index
      %19 = vector.load %arg6[%c0_16, %c0_17, %c0_18] : memref<1x64x128xf32, #tpu.memory_space<vmem>>, vector<1x64x128xf32>
      %20 = vector.shape_cast %19 : vector<1x64x128xf32> to vector<64x128xf32>
      %21 = vector.shape_cast %18 : vector<64x128xf32> to vector<1x64x128xf32>
      tpu.vector_store %arg6[%c0_16, %c0_17, %c0_18], %21 {strides = array<i32>} : memref<1x64x128xf32, #tpu.memory_space<vmem>>, vector<1x64x128xf32>,
      %cst_19 = arith.constant dense<0.000000e+00> : vector<128xf32>
      %22 = vector.multi_reduction <add>, %18, %cst_19 [0] : vector<64x128xf32> to vector<128xf32>
      %23 = vector.shape_cast %22 : vector<128xf32> to vector<1x128xf32>
      %24 = arith.mulf %18, %18 : vector<64x128xf32>
      %cst_20 = arith.constant dense<0.000000e+00> : vector<128xf32>
      %25 = vector.multi_reduction <add>, %24, %cst_20 [0] : vector<64x128xf32> to vector<128xf32>
      %26 = vector.shape_cast %25 : vector<128xf32> to vector<1x128xf32>
      %cst_21 = arith.constant 0.000000e+00 : f32
      %27 = vector.broadcast %cst_21 : f32 to vector<6x128xf32>
      %28 = tpu.concatenate %23, %26, %27 in 0 : vector<1x128xf32>, vector<1x128xf32>, vector<6x128xf32> -> vector<8x128xf32>
      %c0_22 = arith.constant 0 : index
      %c0_23 = arith.constant 0 : index
      %c0_24 = arith.constant 0 : index
      %29 = vector.load %arg7[%c0_22, %c0_23, %c0_24] : memref<1x8x128xf32, #tpu.memory_space<vmem>>, vector<1x8x128xf32>
      %30 = vector.shape_cast %29 : vector<1x8x128xf32> to vector<8x128xf32>
      %31 = arith.addf %30, %28 : vector<8x128xf32>
      %c0_25 = arith.constant 0 : index
      %c0_26 = arith.constant 0 : index
      %c0_27 = arith.constant 0 : index
      %32 = vector.load %arg7[%c0_25, %c0_26, %c0_27] : memref<1x8x128xf32, #tpu.memory_space<vmem>>, vector<1x8x128xf32>
      %33 = vector.shape_cast %32 : vector<1x8x128xf32> to vector<8x128xf32>
      %34 = vector.shape_cast %31 : vector<8x128xf32> to vector<1x8x128xf32>
      tpu.vector_store %arg7[%c0_25, %c0_26, %c0_27], %34 {strides = array<i32>} : memref<1x8x128xf32, #tpu.memory_space<vmem>>, vector<1x8x128xf32>,
    } else {
    }
    return
  }
  func.func @transform_0(%arg0: i32, %arg1: i32, %arg2: i32, %arg3: i32) -> (i32, i32, i32) {
    %c0_i32 = arith.constant 0 : i32
    return %arg0, %arg2, %arg3 : i32, i32, i32
  }
  func.func @transform_1(%arg0: i32, %arg1: i32, %arg2: i32, %arg3: i32) -> (i32, i32) {
    %c0_i32 = arith.constant 0 : i32
    return %arg3, %arg1 : i32, i32
  }
  func.func @transform_2(%arg0: i32, %arg1: i32, %arg2: i32, %arg3: i32) -> (i32, i32, i32) {
    %c0_i32 = arith.constant 0 : i32
    return %arg0, %arg2, %arg1 : i32, i32, i32
  }
  func.func @transform_3(%arg0: i32, %arg1: i32, %arg2: i32, %arg3: i32) -> (i32, i32, i32) {
    %c0_i32 = arith.constant 0 : i32
    %c0_i32_0 = arith.constant 0 : i32
    return %arg0, %c0_i32, %arg1 : i32, i32, i32
  }
}

</mosaic_0001>

<llo_original>
// kernel: tpu_custom_call.1
$region0: #{tpu_custom_call.1}
  #allocation0 [shape = 'u32[]', space=smem, size = 0x4, offset = 0x4, fixed_abs, tag = 'smem constant byte address 0x4 - core index']
  #allocation1 [shape = 'u32[144,128]{1,0:T(1,128)}', space=vmem, size = 0x12000, scoped, tag = 'internal scratch']
  #allocation2 [shape = 'f32[64,128]{1,0:T(8,128)}', space=vmem, size = 0x8000, scoped, tag = 'scratch operand']
  %s0 = inlined_call_operand.hbm [shape: bf16[2,64,128], index: 0, kind: input, shape index: {}]
  %s1 = inlined_call_operand.hbm [shape: bf16[128,128], index: 1, kind: input, shape index: {}]
  %s2 = inlined_call_operand.hbm [shape: f32[2,64,128], index: 2, kind: output, shape index: {0}]
  %s3 = inlined_call_operand.hbm [shape: f32[2,8,128], index: 3, kind: output, shape index: {1}]
  %4 = xla_tuple %s2, %s3
  %s5 = sld [smem:[#allocation0]]
  $region69: #{tpu_custom_call.1} parent=0
    _
  %s7 = ssub.s32 1, %s5
  %s8 = scalar_select 0, %s7, %s5
  $region1: #{tpu_custom_call.1} parent=0
    #allocation3 [shape = 'u8[32768]{0}', space=vmem, size = 0x8000, scoped, tag = 'input window, operand 0']
    #allocation4 [shape = 's32[2]{0}', space=sflag, size = 0x8, scoped, tag = 'scoped memory for tpu_custom_call.1']
    #allocation5 [shape = 's32[2]{0}', space=sflag, size = 0x8, scoped, tag = 'scoped memory for tpu_custom_call.1']
    #allocation6 [shape = 'u8[32768]{0}', space=vmem, size = 0x8000, scoped, tag = 'input window, operand 1, single buffered']
    #allocation7 [shape = 's32[1]{0}', space=sflag, size = 0x4, scoped, tag = 'scoped memory for tpu_custom_call.1']
    #allocation8 [shape = 'u8[65536]{0}', space=vmem, size = 0x10000, scoped, tag = 'output window, operand 0']
    #allocation9 [shape = 'u8[8192]{0}', space=vmem, size = 0x2000, scoped, tag = 'output window, operand 1']
    #allocation10 [shape = 's32[2]{0}', space=sflag, size = 0x8, scoped, tag = 'scoped memory for tpu_custom_call.1']
    %9 = vsyncpa [#allocation4], 0
    %s10 = scalar_lea.sflag [#allocation4], 1
    %11 = vsyncpa %s10, 0
    %12 = vsyncpa [#allocation7], 0
    %13 = vsyncpa [#allocation5], 0
    %s14 = scalar_lea.sflag [#allocation5], 1
    %15 = vsyncpa %s14, 0
    %16 = vsyncpa [#allocation10], 0
    %s17 = scalar_lea.sflag [#allocation10], 1
    %18 = vsyncpa %s17, 0
    loop: start=0, step=1, limit=4
    $region2: #{tpu_custom_call.1} parent=1 // loop_pre_header
      _
    $region3: #{tpu_custom_call.1} parent=1 // loop_header
      %s20 = sphi 0, %s24
      %p21 = scmp.ge.s32.totalorder %s20, 4
      %s27 = sphi 0, %s53
      %s28 = sphi 0, %s49
      %s29 = sphi 0, %s45
      %s30 = sphi 0, %s41
      %s31 = sphi 0, %s27
      %s32 = sphi 0, %s28
      %s33 = sphi 0, %s29
      %s34 = sphi 0, %s30
      %s35 = sphi 0, %s31
      %s36 = sphi 0, %s32
      %s37 = sphi 0, %s33
      %s38 = sphi 0, %s34
      %s60 = sphi 0, %s62
      %s63 = sphi 0, %s60
      %s64 = sphi 0, %s63
      %s80 = sphi 0, %s64
      %s88 = sphi 0, %s90
      %s91 = sphi 0, %s88
      %s92 = sphi 0, %s91
      %s108 = sphi 0, %s92
      %s118 = sphi 0, %s120
      %s121 = sphi 0, %s118
      %s122 = sphi 0, %s121
      %s138 = sphi 0, %s122
      %s146 = sphi 0, %s148
      %s149 = sphi 0, %s146
      %s150 = sphi 0, %s149
      %s166 = sphi 0, %s150
    $region4: #{tpu_custom_call.1} parent=1 // loop_header_branch
      %23 = sbr.rel (%p21) target = $region8
    $region5: #{tpu_custom_call.1} parent=1 // loop_body
      %s25 = ssub.s32 %s20, 1
      %s26 = ssub.s32 %s20, 2
      %s39 = sadd.s32 1, %s30
      %p40 = scmp.ge.s32.totalorder %s39, 1
      %s41 = scalar_select %p40, 0, %s39
      %s42 = sadd.s32 1, %s29
      %s43 = scalar_select %p40, %s42, %s29
      %p44 = scmp.ge.s32.totalorder %s43, 1
      %s45 = scalar_select %p44, 0, %s43
      %s46 = sadd.s32 1, %s28
      %s47 = scalar_select %p44, %s46, %s28
      %p48 = scmp.ge.s32.totalorder %s47, 1
      %s49 = scalar_select %p48, 0, %s47
      %s50 = sadd.s32 1, %s27
      %s51 = scalar_select %p48, %s50, %s27
      %p52 = scmp.ge.s32.totalorder %s51, 2
      %s53 = scalar_select %p52, 0, %s51
      %s54 = ssub.s32 %s27, %s53
      %s55 = ssub.s32 %s29, %s45
      %s56 = sor.u32 %s54, %s55
      %s57 = ssub.s32 %s30, %s41
      %s58 = sor.u32 %s56, %s57
      %p59 = scmp.eq.s32.totalorder %s58, 0
      %s61 = sadd.s32 %s60, 1
      %s62 = scalar_select %p59, %s60, %s61
      %p65 = pneg %p59
      %p66 = scmp.eq.s32.totalorder %s20, 1
      %p67 = por %p65, %p66
      %p68 = scmp.ne.s32.totalorder %s60, %s63
      %p69 = scmp.eq.s32.totalorder %s20, 0
      %p70 = por %p68, %p69
      %p71 = scmp.ne.s32.totalorder %s60, %s63
      %p72 = scmp.eq.s32.totalorder %s25, 1
      %p73 = por %p71, %p72
      %p74 = scmp.ne.s32.totalorder %s63, %s64
      %p75 = scmp.eq.s32.totalorder %s25, 0
      %p76 = por %p74, %p75
      %p77 = scmp.ne.s32.totalorder %s63, %s64
      %p78 = scmp.eq.s32.totalorder %s26, 1
      %p79 = por %p77, %p78
      %p81 = scmp.ne.s32.totalorder %s64, %s80
      %p82 = scmp.eq.s32.totalorder %s26, 0
      %p83 = por %p81, %p82
      %s84 = ssub.s32 %s30, %s41
      %s85 = ssub.s32 %s28, %s49
      %s86 = sor.u32 %s84, %s85
      %p87 = scmp.eq.s32.totalorder %s86, 0
      %s89 = sadd.s32 %s88, 1
      %s90 = scalar_select %p87, %s88, %s89
      %p93 = pneg %p87
      %p94 = scmp.eq.s32.totalorder %s20, 1
      %p95 = por %p93, %p94
      %p96 = scmp.ne.s32.totalorder %s88, %s91
      %p97 = scmp.eq.s32.totalorder %s20, 0
      %p98 = por %p96, %p97
      %p99 = scmp.ne.s32.totalorder %s88, %s91
      %p100 = scmp.eq.s32.totalorder %s25, 1
      %p101 = por %p99, %p100
      %p102 = scmp.ne.s32.totalorder %s91, %s92
      %p103 = scmp.eq.s32.totalorder %s25, 0
      %p104 = por %p102, %p103
      %p105 = scmp.ne.s32.totalorder %s91, %s92
      %p106 = scmp.eq.s32.totalorder %s26, 1
      %p107 = por %p105, %p106
      %p109 = scmp.ne.s32.totalorder %s92, %s108
      %p110 = scmp.eq.s32.totalorder %s26, 0
      %p111 = por %p109, %p110
      %s112 = ssub.s32 %s27, %s53
      %s113 = ssub.s32 %s29, %s45
      %s114 = sor.u32 %s112, %s113
      %s115 = ssub.s32 %s28, %s49
      %s116 = sor.u32 %s114, %s115
      %p117 = scmp.eq.s32.totalorder %s116, 0
      %s119 = sadd.s32 %s118, 1
      %s120 = scalar_select %p117, %s118, %s119
      %p123 = pneg %p117
      %p124 = scmp.eq.s32.totalorder %s20, 1
      %p125 = por %p123, %p124
      %p126 = scmp.ne.s32.totalorder %s118, %s121
      %p127 = scmp.eq.s32.totalorder %s20, 0
      %p128 = por %p126, %p127
      %p129 = scmp.ne.s32.totalorder %s118, %s121
      %p130 = scmp.eq.s32.totalorder %s25, 1
      %p131 = por %p129, %p130
      %p132 = scmp.ne.s32.totalorder %s121, %s122
      %p133 = scmp.eq.s32.totalorder %s25, 0
      %p134 = por %p132, %p133
      %p135 = scmp.ne.s32.totalorder %s121, %s122
      %p136 = scmp.eq.s32.totalorder %s26, 1
      %p137 = por %p135, %p136
      %p139 = scmp.ne.s32.totalorder %s122, %s138
      %p140 = scmp.eq.s32.totalorder %s26, 0
      %p141 = por %p139, %p140
      %s142 = ssub.s32 %s27, %s53
      %s143 = ssub.s32 %s28, %s49
      %s144 = sor.u32 %s142, %s143
      %p145 = scmp.eq.s32.totalorder %s144, 0
      %s147 = sadd.s32 %s146, 1
      %s148 = scalar_select %p145, %s146, %s147
      %p151 = pneg %p145
      %p152 = scmp.eq.s32.totalorder %s20, 1
      %p153 = por %p151, %p152
      %p154 = scmp.ne.s32.totalorder %s146, %s149
      %p155 = scmp.eq.s32.totalorder %s20, 0
      %p156 = por %p154, %p155
      %p157 = scmp.ne.s32.totalorder %s146, %s149
      %p158 = scmp.eq.s32.totalorder %s25, 1
      %p159 = por %p157, %p158
      %p160 = scmp.ne.s32.totalorder %s149, %s150
      %p161 = scmp.eq.s32.totalorder %s25, 0
      %p162 = por %p160, %p161
      %p163 = scmp.ne.s32.totalorder %s149, %s150
      %p164 = scmp.eq.s32.totalorder %s26, 1
      %p165 = por %p163, %p164
      %p167 = scmp.ne.s32.totalorder %s150, %s166
      %p168 = scmp.eq.s32.totalorder %s26, 0
      %p169 = por %p167, %p168
      %p170 = scmp.le.s32.totalorder 1, %s20
      %p171 = scmp.lt.s32.totalorder %s20, 3
      %p172 = pnand %p170, %p171
      %p173 = pneg %p172
      // Predicated region
      $region9: #{tpu_custom_call.1} parent=5 // pred_check
        _
      $region10: #{tpu_custom_call.1} parent=5 // pred_check_branch
        %175 = sbr.rel (%p172) target = $region12
      $region11: #{tpu_custom_call.1} parent=5 // pred_region
        %s176 = ssub.s32 %s20, 1
        // Predicated region
        $region13: #{tpu_custom_call.1} parent=11 // pred_check
          %p177 = pneg %p104
        $region14: #{tpu_custom_call.1} parent=11 // pred_check_branch
          %179 = sbr.rel (%p177) target = $region16
        $region15: #{tpu_custom_call.1} parent=11 // pred_region
          %s180 = smul.u32 16, %s34
          %s182 = ssub.s32 1024, 1024
          %183 = vsyncadd [#allocation7], %s182
          %s184 = sadd.s32 %s32, %s180
          %s185 = smul.addr %s184, 64
          %s186 = scalar_lea.hbm %s1, %s185
          %s187 = sshll.u32 [#allocation6], 4
          %s188 = int_to_ptr.vmem [resolvable:$true] %s187
          %193 = dma.hbm_to_vmem [thread:$0]  %s186, 1024, %s188, [#allocation7], 64, 64, 4
        $region16: #{tpu_custom_call.1} parent=11 // pred_fallthru
          _
      $region12: #{tpu_custom_call.1} parent=5 // pred_fallthru
        _
      %p194 = scmp.lt.s32.totalorder %s20, 2
      // Predicated region
      $region17: #{tpu_custom_call.1} parent=5 // pred_check
        %p195 = pneg %p194
      $region18: #{tpu_custom_call.1} parent=5 // pred_check_branch
        %197 = sbr.rel (%p195) target = $region20
      $region19: #{tpu_custom_call.1} parent=5 // pred_region
        // Predicated region
        $region21: #{tpu_custom_call.1} parent=19 // pred_check
          %p198 = pneg %p70
        $region22: #{tpu_custom_call.1} parent=19 // pred_check_branch
          %200 = sbr.rel (%p198) target = $region24
        $region23: #{tpu_custom_call.1} parent=19 // pred_region
          %s201 = sand.u32 %s60, 1
          %s202 = scalar_lea.sflag [#allocation4], %s201
          %s203 = sand.u32 %s60, 1
          %s204 = smul.addr %s203, 32
          %s205 = scalar_lea.vmem [#allocation3], %s204
          %s206 = smul.u32 8, %s29
          %s208 = ssub.s32 512, 512
          %209 = vsyncadd %s202, %s208
          %s210 = sadd.s32 %s30, %s206
          %s211 = smul.addr %s27, 8
          %s212 = sadd.s32 %s210, %s211
          %s213 = smul.addr %s212, 64
          %s214 = scalar_lea.hbm %s0, %s213
          %s215 = sshll.u32 %s205, 4
          %s216 = int_to_ptr.vmem [resolvable:$true] %s215
          %221 = dma.hbm_to_vmem [thread:$0]  %s214, 512, %s216, %s202, 64, 64, 4
        $region24: #{tpu_custom_call.1} parent=19 // pred_fallthru
          _
      $region20: #{tpu_custom_call.1} parent=5 // pred_fallthru
        _
      %p222 = scmp.le.s32.totalorder 1, %s20
      %p223 = scmp.lt.s32.totalorder %s20, 3
      %p224 = pnand %p222, %p223
      %p225 = pneg %p224
      // Predicated region
      $region25: #{tpu_custom_call.1} parent=5 // pred_check
        _
      $region26: #{tpu_custom_call.1} parent=5 // pred_check_branch
        %227 = sbr.rel (%p224) target = $region28
      $region27: #{tpu_custom_call.1} parent=5 // pred_region
        %s228 = ssub.s32 %s20, 1
        %s229 = sand.u32 %s63, 1
        %s230 = scalar_lea.sflag [#allocation4], %s229
        %s231 = sand.u32 %s63, 1
        %s232 = smul.addr %s231, 32
        %s233 = scalar_lea.vmem [#allocation3], %s232
        // Predicated region
        $region29: #{tpu_custom_call.1} parent=27 // pred_check
          %p234 = pneg %p76
        $region30: #{tpu_custom_call.1} parent=27 // pred_check_branch
          %236 = sbr.rel (%p234) target = $region32
        $region31: #{tpu_custom_call.1} parent=27 // pred_region
          %237 = dma.done %s230, 512
        $region32: #{tpu_custom_call.1} parent=27 // pred_fallthru
          _
        // Predicated region
        $region33: #{tpu_custom_call.1} parent=27 // pred_check
          %p238 = pneg %p104
        $region34: #{tpu_custom_call.1} parent=27 // pred_check_branch
          %240 = sbr.rel (%p238) target = $region36
        $region35: #{tpu_custom_call.1} parent=27 // pred_region
          %241 = dma.done [#allocation7], 1024
        $region36: #{tpu_custom_call.1} parent=27 // pred_fallthru
          _
        %s242 = sand.u32 %s63, 1
        %s243 = scalar_lea.sflag [#allocation4], %s242
        %s244 = sand.u32 %s63, 1
        %s245 = smul.addr %s244, 32
        %s246 = scalar_lea.vmem [#allocation3], %s245
        %p247 = pneg %p76
        %p248 = pneg %p73
        %p249 = pneg %p104
        %p250 = pneg %p101
        %p251 = pneg %p134
        %p252 = pneg %p131
        %s253 = sand.u32 %s121, 1
        %s254 = scalar_lea.sflag [#allocation5], %s253
        %s255 = sand.u32 %s121, 1
        %s256 = smul.addr %s255, 64
        %s257 = scalar_lea.vmem [#allocation8], %s256
        %p258 = pneg %p162
        %p259 = pneg %p159
        %s260 = sand.u32 %s149, 1
        %s261 = scalar_lea.sflag [#allocation10], %s260
        %s262 = sand.u32 %s149, 1
        %s263 = smul.addr %s262, 8
        %s264 = scalar_lea.vmem [#allocation9], %s263
        %s265 = smul.u32 8, %s33
        %s266 = smul.u32 16, %s34
        %s267 = smul.u32 8, %s33
        %p269 = scmp.eq.s32.totalorder %s33, 0
        %p270 = scmp.eq.s32.totalorder %s34, 0
        %p271 = pnand %p269, %p270
        %p272 = pneg %p271
        // Predicated region
        $region37: #{tpu_custom_call.1} parent=27 // pred_check
          _
        $region38: #{tpu_custom_call.1} parent=27 // pred_check_branch
          %274 = sbr.rel (%p271) target = $region40
        $region39: #{tpu_custom_call.1} parent=27 // pred_region
          %275 = vst [vmem:[%s264] sm:$0xff] 0.0
        $region40: #{tpu_custom_call.1} parent=27 // pred_fallthru
          _
        // Predicated region
        $region41: #{tpu_custom_call.1} parent=27 // pred_check
          %p276 = pneg %p270
        $region42: #{tpu_custom_call.1} parent=27 // pred_check_branch
          %278 = sbr.rel (%p276) target = $region44
        $region43: #{tpu_custom_call.1} parent=27 // pred_region
          %279 = vst [vmem:[#allocation2] sm:$0xff] 0.0
          %280 = vst [vmem:[#allocation2 + $0x8] sm:$0xff] 0.0
          %281 = vst [vmem:[#allocation2 + $0x10] sm:$0xff] 0.0
          %282 = vst [vmem:[#allocation2 + $0x18] sm:$0xff] 0.0
          %283 = vst [vmem:[#allocation2 + $0x20] sm:$0xff] 0.0
          %284 = vst [vmem:[#allocation2 + $0x28] sm:$0xff] 0.0
          %285 = vst [vmem:[#allocation2 + $0x30] sm:$0xff] 0.0
          %286 = vst [vmem:[#allocation2 + $0x38] sm:$0xff] 0.0
        $region44: #{tpu_custom_call.1} parent=27 // pred_fallthru
          _
        %v287 = vld [vmem:[#allocation2] sm:$0xff]
        %v288 = vld [vmem:[#allocation2 + $0x8] sm:$0xff]
        %v289 = vld [vmem:[#allocation2 + $0x10] sm:$0xff]
        %v290 = vld [vmem:[#allocation2 + $0x18] sm:$0xff]
        %v291 = vld [vmem:[#allocation2 + $0x20] sm:$0xff]
        %v292 = vld [vmem:[#allocation2 + $0x28] sm:$0xff]
        %v293 = vld [vmem:[#allocation2 + $0x30] sm:$0xff]
        %v294 = vld [vmem:[#allocation2 + $0x38] sm:$0xff]
        %v295 = vld [vmem:[%s233] sm:$0xf]
        %v296 = vld [vmem:[%s233 + $0x4] sm:$0xf]
        %v297 = vld [vmem:[%s233 + $0x8] sm:$0xf]
        %v298 = vld [vmem:[%s233 + $0xc] sm:$0xf]
        %v299 = vld [vmem:[%s233 + $0x10] sm:$0xf]
        %v300 = vld [vmem:[%s233 + $0x14] sm:$0xf]
        %v301 = vld [vmem:[%s233 + $0x18] sm:$0xf]
        %v302 = vld [vmem:[%s233 + $0x1c] sm:$0xf]
        %v303 = vld [vmem:[#allocation6] sm:$0xf]
        %v304 = vld [vmem:[#allocation6 + $0x4] sm:$0xf]
        %v305 = vld [vmem:[#allocation6 + $0x8] sm:$0xf]
        %v306 = vld [vmem:[#allocation6 + $0xc] sm:$0xf]
        %v307 = vld [vmem:[#allocation6 + $0x10] sm:$0xf]
        %v308 = vld [vmem:[#allocation6 + $0x14] sm:$0xf]
        %v309 = vld [vmem:[#allocation6 + $0x18] sm:$0xf]
        %v310 = vld [vmem:[#allocation6 + $0x1c] sm:$0xf]
        %v311 = vld [vmem:[#allocation6 + $0x20] sm:$0xf]
        %v312 = vld [vmem:[#allocation6 + $0x24] sm:$0xf]
        %v313 = vld [vmem:[#allocation6 + $0x28] sm:$0xf]
        %v314 = vld [vmem:[#allocation6 + $0x2c] sm:$0xf]
        %v315 = vld [vmem:[#allocation6 + $0x30] sm:$0xf]
        %v316 = vld [vmem:[#allocation6 + $0x34] sm:$0xf]
        %v317 = vld [vmem:[#allocation6 + $0x38] sm:$0xf]
        %v318 = vld [vmem:[#allocation6 + $0x3c] sm:$0xf]
        %v327 = vunpack.c.l.b16 %v295
        %v328 = vunpack.c.l.b16 %v296
        %v329 = vunpack.c.l.b16 %v297
        %v330 = vunpack.c.l.b16 %v298
        %v331 = vunpack.c.l.b16 %v299
        %v332 = vunpack.c.l.b16 %v300
        %v333 = vunpack.c.l.b16 %v301
        %v334 = vunpack.c.l.b16 %v302
        %v335 = vpack.c.b16 %v328, %v327
        %v336 = vpack.c.b16 %v330, %v329
        %v337 = vpack.c.b16 %v332, %v331
        %v338 = vpack.c.b16 %v334, %v333
        %v359 = vunpack.c.l.b16 %v303
        %v360 = vunpack.c.l.b16 %v304
        %v361 = vunpack.c.l.b16 %v305
        %v362 = vunpack.c.l.b16 %v306
        %v363 = vunpack.c.l.b16 %v307
        %v364 = vunpack.c.l.b16 %v308
        %v365 = vunpack.c.l.b16 %v309
        %v366 = vunpack.c.l.b16 %v310
        %v367 = vunpack.c.l.b16 %v311
        %v368 = vunpack.c.l.b16 %v312
        %v369 = vunpack.c.l.b16 %v313
        %v370 = vunpack.c.l.b16 %v314
        %v371 = vunpack.c.l.b16 %v315
        %v372 = vunpack.c.l.b16 %v316
        %v373 = vunpack.c.l.b16 %v317
        %v374 = vunpack.c.l.b16 %v318
        %v375 = vpack.c.b16 %v360, %v359
        %v376 = vpack.c.b16 %v362, %v361
        %v377 = vpack.c.b16 %v364, %v363
        %v378 = vpack.c.b16 %v366, %v365
        %v379 = vpack.c.b16 %v368, %v367
        %v380 = vpack.c.b16 %v370, %v369
        %v381 = vpack.c.b16 %v372, %v371
        %v382 = vpack.c.b16 %v374, %v373
        %391 = vmatprep.subr.bf16.mxu0 0
        %392 = vmatpush1.bf16.msra.mxu0 %v375
        %393 = vmatprep.subr.bf16.mxu0 0
        %394 = vmatpush1.bf16.msra.mxu0 %v376
        %395 = vmatprep.subr.bf16.mxu0 0
        %396 = vmatpush1.bf16.msra.mxu0 %v377
        %397 = vmatprep.subr.bf16.mxu0 0
        %398 = vmatpush1.bf16.msra.mxu0 %v378
        %399 = vmatprep.subr.bf16.mxu0 0
        %400 = vmatpush1.bf16.msra.mxu0 %v379
        %401 = vmatprep.subr.bf16.mxu0 0
        %402 = vmatpush1.bf16.msra.mxu0 %v380
        %403 = vmatprep.subr.bf16.mxu0 0
        %404 = vmatpush1.bf16.msra.mxu0 %v381
        %405 = vmatprep.subr.bf16.mxu0 0
        %406 = vmatpush1.bf16.msra.mxu0 %v382
        %407 = vmatprep.subr.bf16.mxu0 0
        %408 = vmatpush1.bf16.msra.mxu0 0
        %409 = vmatprep.subr.bf16.mxu0 0
        %410 = vmatpush1.bf16.msra.mxu0 0
        %411 = vmatprep.subr.bf16.mxu0 0
        %412 = vmatpush1.bf16.msra.mxu0 0
        %413 = vmatprep.subr.bf16.mxu0 0
        %414 = vmatpush1.bf16.msra.mxu0 0
        %415 = vmatprep.subr.bf16.mxu0 0
        %416 = vmatpush1.bf16.msra.mxu0 0
        %417 = vmatprep.subr.bf16.mxu0 0
        %418 = vmatpush1.bf16.msra.mxu0 0
        %419 = vmatprep.subr.bf16.mxu0 0
        %420 = vmatpush1.bf16.msra.mxu0 0
        %421 = vmatprep.subr.bf16.mxu0 0
        %422 = vmatpush1.bf16.msra.mxu0 0
        %423 = vmatprep.mubr.bf16.mxu0 0
        %424 = vmatmul.mubr.bf16.gmra.mrb[0].mxu0 %v335
        %v425 = vpop.f32.mrb[0].mxu0
        %v426 = vadd.f32 0.0, %v425
        %v427 = vpop.f32.mrb[0].mxu0
        %v428 = vpop.f32.mrb[0].mxu0
        %v429 = vadd.f32 0.0, %v428
        %v430 = vpop.f32.mrb[0].mxu0
        %431 = vmatprep.mubr.bf16.mxu0 0
        %432 = vmatmul.mubr.bf16.gmra.mrb[0].mxu0 %v336
        %v433 = vpop.f32.mrb[0].mxu0
        %v434 = vadd.f32 0.0, %v433
        %v435 = vpop.f32.mrb[0].mxu0
        %v436 = vpop.f32.mrb[0].mxu0
        %v437 = vadd.f32 0.0, %v436
        %v438 = vpop.f32.mrb[0].mxu0
        %439 = vmatprep.mubr.bf16.mxu0 0
        %440 = vmatmul.mubr.bf16.gmra.mrb[0].mxu0 %v337
        %v441 = vpop.f32.mrb[0].mxu0
        %v442 = vadd.f32 0.0, %v441
        %v443 = vpop.f32.mrb[0].mxu0
        %v444 = vpop.f32.mrb[0].mxu0
        %v445 = vadd.f32 0.0, %v444
        %v446 = vpop.f32.mrb[0].mxu0
        %447 = vmatprep.mubr.bf16.mxu0 0
        %448 = vmatmul.mubr.bf16.gmra.mrb[0].mxu0 %v338
        %v449 = vpop.f32.mrb[0].mxu0
        %v450 = vadd.f32 0.0, %v449
        %v451 = vpop.f32.mrb[0].mxu0
        %v452 = vpop.f32.mrb[0].mxu0
        %v453 = vadd.f32 0.0, %v452
        %v454 = vpop.f32.mrb[0].mxu0
        %455 = vdwg.mxu0
        %v456 = vadd.f32 %v287, %v426
        %v457 = vadd.f32 %v288, %v429
        %v458 = vadd.f32 %v289, %v434
        %v459 = vadd.f32 %v290, %v437
        %v460 = vadd.f32 %v291, %v442
        %v461 = vadd.f32 %v292, %v445
        %v462 = vadd.f32 %v293, %v450
        %v463 = vadd.f32 %v294, %v453
        %464 = vst [vmem:[#allocation2] sm:$0xff] %v456
        %465 = vst [vmem:[#allocation2 + $0x8] sm:$0xff] %v457
        %466 = vst [vmem:[#allocation2 + $0x10] sm:$0xff] %v458
        %467 = vst [vmem:[#allocation2 + $0x18] sm:$0xff] %v459
        %468 = vst [vmem:[#allocation2 + $0x20] sm:$0xff] %v460
        %469 = vst [vmem:[#allocation2 + $0x28] sm:$0xff] %v461
        %470 = vst [vmem:[#allocation2 + $0x30] sm:$0xff] %v462
        %471 = vst [vmem:[#allocation2 + $0x38] sm:$0xff] %v463
        // Predicated region
        $region45: #{tpu_custom_call.1} parent=27 // pred_check
          %p472 = pneg %p270
        $region46: #{tpu_custom_call.1} parent=27 // pred_check_branch
          %474 = sbr.rel (%p472) target = $region48
        $region47: #{tpu_custom_call.1} parent=27 // pred_region
          %v475 = vld [vmem:[#allocation2] sm:$0xff]
          %v476 = vld [vmem:[#allocation2 + $0x8] sm:$0xff]
          %v477 = vld [vmem:[#allocation2 + $0x10] sm:$0xff]
          %v478 = vld [vmem:[#allocation2 + $0x18] sm:$0xff]
          %v479 = vld [vmem:[#allocation2 + $0x20] sm:$0xff]
          %v480 = vld [vmem:[#allocation2 + $0x28] sm:$0xff]
          %v481 = vld [vmem:[#allocation2 + $0x30] sm:$0xff]
          %v482 = vld [vmem:[#allocation2 + $0x38] sm:$0xff]
          %483 = vst [vmem:[%s257] sm:$0xff] %v475
          %484 = vst [vmem:[%s257 + $0x8] sm:$0xff] %v476
          %485 = vst [vmem:[%s257 + $0x10] sm:$0xff] %v477
          %486 = vst [vmem:[%s257 + $0x18] sm:$0xff] %v478
          %487 = vst [vmem:[%s257 + $0x20] sm:$0xff] %v479
          %488 = vst [vmem:[%s257 + $0x28] sm:$0xff] %v480
          %489 = vst [vmem:[%s257 + $0x30] sm:$0xff] %v481
          %490 = vst [vmem:[%s257 + $0x38] sm:$0xff] %v482
          %v491 = vadd.f32 %v475, %v476
          %v492 = vadd.f32 %v491, %v477
          %v493 = vadd.f32 %v492, %v478
          %v494 = vadd.f32 %v493, %v479
          %v495 = vadd.f32 %v494, %v480
          %v496 = vadd.f32 %v495, %v481
          %v497 = vadd.f32 %v496, %v482
          %v498 = vrot.slane %v497, 4
          %v499 = vadd.f32 %v497, %v498
          %v500 = vrot.slane %v499, 2
          %v501 = vadd.f32 %v499, %v500
          %v502 = vrot.slane %v501, 1
          %v503 = vadd.f32 %v501, %v502
          %v504 = vmul.f32 %v475, %v475
          %v505 = vmul.f32 %v476, %v476
          %v506 = vmul.f32 %v477, %v477
          %v507 = vmul.f32 %v478, %v478
          %v508 = vmul.f32 %v479, %v479
          %v509 = vmul.f32 %v480, %v480
          %v510 = vmul.f32 %v481, %v481
          %v511 = vmul.f32 %v482, %v482
          %v512 = vadd.f32 %v504, %v505
          %v513 = vadd.f32 %v512, %v506
          %v514 = vadd.f32 %v513, %v507
          %v515 = vadd.f32 %v514, %v508
          %v516 = vadd.f32 %v515, %v509
          %v517 = vadd.f32 %v516, %v510
          %v518 = vadd.f32 %v517, %v511
          %v519 = vrot.slane %v518, 4
          %v520 = vadd.f32 %v518, %v519
          %v521 = vrot.slane %v520, 2
          %v522 = vadd.f32 %v520, %v521
          %v523 = vrot.slane %v522, 1
          %v524 = vadd.f32 %v522, %v523
          %vm525 = vcmask 1040384
          %v526 = vsel %vm525, %v503, %v524
          %vm527 = vcmask 1041408
          %v528 = vsel %vm527, %v526, 0.0
          %v529 = vld [vmem:[%s264] sm:$0xff]
          %v530 = vadd.f32 %v529, %v528
          %531 = vst [vmem:[%s264] sm:$0xff] %v530
        $region48: #{tpu_custom_call.1} parent=27 // pred_fallthru
          _
        %s532 = sand.u32 %s121, 1
        %s533 = scalar_lea.sflag [#allocation5], %s532
        %s534 = sand.u32 %s121, 1
        %s535 = smul.addr %s534, 64
        %s536 = scalar_lea.vmem [#allocation8], %s535
        %s537 = sand.u32 %s149, 1
        %s538 = scalar_lea.sflag [#allocation10], %s537
        %s539 = sand.u32 %s149, 1
        %s540 = smul.addr %s539, 8
        %s541 = scalar_lea.vmem [#allocation9], %s540
        // Predicated region
        $region49: #{tpu_custom_call.1} parent=27 // pred_check
          %p542 = pneg %p131
        $region50: #{tpu_custom_call.1} parent=27 // pred_check_branch
          %544 = sbr.rel (%p542) target = $region52
        $region51: #{tpu_custom_call.1} parent=27 // pred_region
          %s545 = smul.u32 8, %s33
          %s547 = ssub.s32 1024, 1024
          %548 = vsyncadd %s533, %s547
          %s549 = sadd.s32 %s32, %s545
          %s550 = smul.addr %s31, 8
          %s551 = sadd.s32 %s549, %s550
          %s552 = smul.addr %s551, 128
          %s553 = scalar_lea.hbm %s2, %s552
          %s554 = sshll.u32 %s536, 4
          %s555 = int_to_ptr.vmem [resolvable:$true] %s554
          %560 = dma.vmem_to_hbm [thread:$0]  %s555, 1024, %s553, %s533, 128, 128, 8
        $region52: #{tpu_custom_call.1} parent=27 // pred_fallthru
          _
        // Predicated region
        $region53: #{tpu_custom_call.1} parent=27 // pred_check
          %p561 = pneg %p159
        $region54: #{tpu_custom_call.1} parent=27 // pred_check_branch
          %563 = sbr.rel (%p561) target = $region56
        $region55: #{tpu_custom_call.1} parent=27 // pred_region
          %s565 = ssub.s32 128, 128
          %566 = vsyncadd %s538, %s565
          %s567 = sadd.s32 %s32, %s31
          %s568 = smul.addr %s567, 128
          %s569 = scalar_lea.hbm %s3, %s568
          %s571 = sshll.u32 %s541, 4
          %s572 = int_to_ptr.vmem [resolvable:$true] %s571
          %574 = dma.vmem_to_hbm [thread:$0]  %s572, 128, %s569, %s538
        $region56: #{tpu_custom_call.1} parent=27 // pred_fallthru
          _
      $region28: #{tpu_custom_call.1} parent=5 // pred_fallthru
        _
      %p575 = scmp.le.s32.totalorder 2, %s20
      // Predicated region
      $region57: #{tpu_custom_call.1} parent=5 // pred_check
        %p576 = pneg %p575
      $region58: #{tpu_custom_call.1} parent=5 // pred_check_branch
        %578 = sbr.rel (%p576) target = $region60
      $region59: #{tpu_custom_call.1} parent=5 // pred_region
        %s579 = ssub.s32 %s20, 2
        // Predicated region
        $region61: #{tpu_custom_call.1} parent=59 // pred_check
          %p580 = pneg %p137
        $region62: #{tpu_custom_call.1} parent=59 // pred_check_branch
          %582 = sbr.rel (%p580) target = $region64
        $region63: #{tpu_custom_call.1} parent=59 // pred_region
          %s583 = sand.u32 %s122, 1
          %s584 = scalar_lea.sflag [#allocation5], %s583
          %s585 = sand.u32 %s122, 1
          %s586 = smul.addr %s585, 64
          %s587 = scalar_lea.vmem [#allocation8], %s586
          %588 = dma.done %s584, 1024
        $region64: #{tpu_custom_call.1} parent=59 // pred_fallthru
          _
        // Predicated region
        $region65: #{tpu_custom_call.1} parent=59 // pred_check
          %p589 = pneg %p165
        $region66: #{tpu_custom_call.1} parent=59 // pred_check_branch
          %591 = sbr.rel (%p589) target = $region68
        $region67: #{tpu_custom_call.1} parent=59 // pred_region
          %s592 = sand.u32 %s150, 1
          %s593 = scalar_lea.sflag [#allocation10], %s592
          %s594 = sand.u32 %s150, 1
          %s595 = smul.addr %s594, 8
          %s596 = scalar_lea.vmem [#allocation9], %s595
          %597 = dma.done %s593, 128
        $region68: #{tpu_custom_call.1} parent=59 // pred_fallthru
          _
      $region60: #{tpu_custom_call.1} parent=5 // pred_fallthru
        _
    $region6: #{tpu_custom_call.1} parent=1 // loop_footer
      %s24 = sadd.s32 1, %s20
    $region7: #{tpu_custom_call.1} parent=1 // loop_footer_branch
      %19 = sbr.rel target = $region3
    $region8: #{tpu_custom_call.1} parent=1 // loop_exit
      _
    %598 = vsyncpa [#allocation4], 1
    %s599 = scalar_lea.sflag [#allocation4], 1
    %600 = vsyncpa %s599, 1
    %601 = vsyncpa [#allocation7], 1
    %602 = vsyncpa [#allocation5], 1
    %s603 = scalar_lea.sflag [#allocation5], 1
    %604 = vsyncpa %s603, 1
    %605 = vsyncpa [#allocation10], 1
    %s606 = scalar_lea.sflag [#allocation10], 1
    %607 = vsyncpa %s606, 1

</llo_original>
